<compile_context>
chip_gen: v5e
topology: v5e:2x2
jax: 0.10.0
libtpu: 0.0.40
codegen_flags: <defaults>
</compile_context>

<pallas_src>
import jax
import jax.numpy as jnp
from jax.experimental import pallas as pl
from jax.experimental.pallas import tpu as pltpu


def _round_up(a: int, m: int) -> int:
    return ((a + m - 1) // m) * m


def _logreg_kernel(x_ref, w_ref, b_ref, o_ref):
    # x_ref: (tb, k*F) VMEM in the streamed dtype (f32 or bf16)
    # w_ref: (k*F, k) f32 VMEM, block-diagonal packed weight (resident)
    # b_ref: (1,)     f32 SMEM scalar bias
    # o_ref: (tb, k)  f32 VMEM
    x = x_ref[...].astype(jnp.float32)                    # in-kernel upcast is free (VPU slack)
    logits = jnp.dot(x, w_ref[...], preferred_element_type=jnp.float32) + b_ref[0]
    o_ref[...] = jax.nn.sigmoid(logits).astype(o_ref.dtype)


def logistic_regression(x, weight, bias):
    """sigmoid(x @ weight.T + bias); x: (B, F), weight: (1, F), bias: (1,) -> (B, 1) f32."""
    B, F = x.shape
    # Stream x in its native dtype: bf16 passes through (halves HBM traffic); anything
    # that is neither f32 nor bf16 is upcast once.
    if x.dtype not in (jnp.float32, jnp.bfloat16):
        x = x.astype(jnp.float32)
    w = jnp.asarray(weight, jnp.float32).reshape(1, F)
    b = jnp.asarray(bias, jnp.float32).reshape(1)

    # ---- Row packing for narrow feature dims ----
    k = max(1, 128 // F)                      # rows packed per 128-lane row
    width = k * F
    # Block-diagonal packed weight: column j holds w in rows j*F..(j+1)*F-1.
    w_bd = jnp.kron(jnp.eye(k, dtype=jnp.float32), w.reshape(F, 1))   # (k*F, k)

    # ---- VMEM-budgeted batch tile (lane-padded arithmetic, all double buffers) ----
    itemsize = int(x.dtype.itemsize)
    try:
        vmem_cap = int(pltpu.get_tpu_info().vmem_capacity_bytes)
    except Exception:
        vmem_cap = 64 << 20                   # conservative (v7x-sized) fallback
    # v5e/v6e (128 MiB VMEM) -> 64 MiB budget; v7x (64 MiB VMEM) -> 40 MiB budget.
    total_budget = min(64 << 20, (vmem_cap * 5) // 8)

    x_row_bytes = _round_up(width, 128) * itemsize        # lane-padded streamed row
    out_row_bytes = _round_up(k, 128) * 4                  # output block is lane-padded too
    w_tile_bytes = _round_up(width, 8) * _round_up(k, 128) * 4
    per_row = 2 * (x_row_bytes + out_row_bytes)            # double-buffered in + out
    avail = max(total_budget - 2 * w_tile_bytes, 8 * per_row)
    tb = max(8, (avail // per_row) // 8 * 8)
    # TODO(synk): add an F-tiling grid axis with a VMEM accumulator for F so large that
    # even an 8-row tile exceeds the VMEM budget.

    rows = (B + k - 1) // k                                # packed rows needed
    # Keep >= 2 grid steps whenever possible so both v7x TensorCores get work on the
    # "parallel" batch axis and the pipeline actually overlaps DMA with compute.
    tb = min(tb, max(8, _round_up((rows + 1) // 2, 8)))
    rows_pad = _round_up(rows, tb)

    # Pad the batch only when needed; padded rows compute sigmoid(bias) and are sliced off.
    # TODO(synk): mask the ragged last tile in-kernel instead — jnp.pad is an extra HBM
    # pass over x when B is large and not a multiple of k*tb.
    b_elems = rows_pad * k
    if b_elems != B:
        x = jnp.pad(x, ((0, b_elems - B), (0, 0)))
    xp = x.reshape(rows_pad, width)                        # contiguous -> free reshape

    footprint = 2 * tb * (x_row_bytes + out_row_bytes) + 2 * w_tile_bytes
    vmem_limit = int(min(vmem_cap, max(32 << 20, footprint + (8 << 20))))

    # TODO(synk): sweep pipeline_mode=pl.Buffered(3) on the x spec if traces show exposed DMA.
    out = pl.pallas_call(
        _logreg_kernel,
        out_shape=jax.ShapeDtypeStruct((rows_pad, k), jnp.float32),
        grid_spec=pltpu.PrefetchScalarGridSpec(
            num_scalar_prefetch=0,
            grid=(rows_pad // tb,),
            in_specs=[
                pl.BlockSpec((tb, width), lambda i: (i, 0)),          # stream packed x
                pl.BlockSpec((width, k), lambda i: (0, 0)),           # resident packed weight
                pl.BlockSpec(memory_space=pltpu.MemorySpace.SMEM),    # bias scalar
            ],
            out_specs=pl.BlockSpec((tb, k), lambda i: (i, 0)),
        ),
        compiler_params=pltpu.CompilerParams(
            dimension_semantics=("parallel",),
            vmem_limit_bytes=vmem_limit,
        ),
        cost_estimate=pl.CostEstimate(
            flops=int(2 * B * F),
            transcendentals=int(B),
            bytes_accessed=int(B * F * itemsize + B * 4 + F * 4 + 4),
        ),
    )(xp, w_bd, b)

    # Output blocks span full rows of the (rows_pad, k) result, so the HBM writeback is
    # contiguous and its bytes are ~F x smaller than the x stream; a fully lane-dense
    # (k, tb) output would need an in-kernel transpose whose lowering risk outweighs the
    # few-percent gain here.
    return out.reshape(-1)[:B].reshape(B, 1)


if __name__ == "__main__":
    key = jax.random.PRNGKey(0)
    kx1, kw1, kb1, kx2, kw2, kb2 = jax.random.split(key, 6)

    # Case 1: module's nominal setup — f32 input, n_features=32 (k=4 rows packed per
    # 128-lane row), batch 64 -> grid of 2 "parallel" steps.
    B1, F1 = 64, 32
    x1 = jax.random.normal(kx1, (B1, F1), dtype=jnp.float32)
    bound1 = 1.0 / (F1 ** 0.5)
    w1 = jax.random.uniform(kw1, (1, F1), minval=-bound1, maxval=bound1, dtype=jnp.float32)
    b1 = jax.random.uniform(kb1, (1,), minval=-bound1, maxval=bound1, dtype=jnp.float32)
    y1 = jax.block_until_ready(logistic_regression(x1, w1, b1))
    ref1 = jax.nn.sigmoid(jnp.dot(x1, w1.T, precision=jax.lax.Precision.HIGHEST) + b1)
    assert y1.shape == (B1, 1)
    # Tolerance covers possible bf16-decomposed MXU passes at default matmul precision.
    assert jnp.allclose(y1, ref1, atol=3e-3, rtol=3e-3), float(jnp.max(jnp.abs(y1 - ref1)))

    # Case 2: bf16 streaming, F=20 (non-divisor packing, k=6, width=120), ragged batch
    # (exercises the padding + tail-slice path).
    B2, F2 = 50, 20
    x2 = jax.random.normal(kx2, (B2, F2), dtype=jnp.float32).astype(jnp.bfloat16)
    bound2 = 1.0 / (F2 ** 0.5)
    w2 = jax.random.uniform(kw2, (1, F2), minval=-bound2, maxval=bound2, dtype=jnp.float32)
    b2 = jax.random.uniform(kb2, (1,), minval=-bound2, maxval=bound2, dtype=jnp.float32)
    y2 = jax.block_until_ready(logistic_regression(x2, w2, b2))
    ref2 = jax.nn.sigmoid(
        jnp.dot(x2.astype(jnp.float32), w2.T, precision=jax.lax.Precision.HIGHEST) + b2)
    assert y2.shape == (B2, 1)
    assert jnp.allclose(y2, ref2, atol=2e-2, rtol=2e-2), float(jnp.max(jnp.abs(y2 - ref2)))

    print("KERNEL_OK")
</pallas_src>

<mosaic_0001>
module attributes {stable_mosaic.version = 11 : i64} {
  func.func @_logreg_kernel(%arg0: i32, %arg1: memref<8x128xf32, #tpu.memory_space<vmem>>, %arg2: memref<128x4xf32, #tpu.memory_space<vmem>>, %arg3: memref<1xf32, #tpu.memory_space<smem>>, %arg4: memref<8x4xf32, #tpu.memory_space<vmem>>) attributes {dimension_semantics = [#tpu.dimension_semantics<parallel>], iteration_bounds = array<i64: 2>, scalar_prefetch = 0 : i64, scratch_operands = 0 : i64, tpu.core_type = #tpu.core_type<tc>, window_params = [{transform_indices = @transform_0, window_bounds = array<i64: 8, 128>}, {pipeline_mode = #tpu.pipeline_mode<synchronous>, transform_indices = @transform_1, window_bounds = array<i64: 128, 4>}, {transform_indices = @transform_2, window_bounds = array<i64: 1>}, {transform_indices = @transform_3, window_bounds = array<i64: 8, 4>}]} {
    %c0 = arith.constant 0 : index
    %c0_0 = arith.constant 0 : index
    %0 = vector.load %arg1[%c0, %c0_0] : memref<8x128xf32, #tpu.memory_space<vmem>>, vector<8x128xf32>
    %c0_1 = arith.constant 0 : index
    %c0_2 = arith.constant 0 : index
    %1 = vector.load %arg2[%c0_1, %c0_2] : memref<128x4xf32, #tpu.memory_space<vmem>>, vector<128x4xf32>
    %cst = arith.constant dense<0.000000e+00> : vector<8x4xf32>
    %2 = tpu.matmul %0, %1, %cst {dimension_numbers = #tpu.dot_dimension_numbers<[1], [0], [0], [1], [0, 0, 1, 1], [], []>} : vector<8x128xf32>, vector<128x4xf32>, vector<8x4xf32> -> vector<8x4xf32>
    %c0_3 = arith.constant 0 : index
    %3 = memref.load %arg3[%c0_3] : memref<1xf32, #tpu.memory_space<smem>>
    %4 = vector.broadcast %3 : f32 to vector<8x4xf32>
    %5 = arith.addf %2, %4 : vector<8x4xf32>
    %6 = arith.negf %5 : vector<8x4xf32>
    %7 = math.exp %6 : vector<8x4xf32>
    %cst_4 = arith.constant 1.000000e+00 : f32
    %8 = vector.broadcast %cst_4 : f32 to vector<8x4xf32>
    %9 = arith.addf %8, %7 : vector<8x4xf32>
    %10 = arith.divf %8, %9 : vector<8x4xf32>
    %c0_5 = arith.constant 0 : index
    %c0_6 = arith.constant 0 : index
    %11 = vector.load %arg4[%c0_5, %c0_6] : memref<8x4xf32, #tpu.memory_space<vmem>>, vector<8x4xf32>
    tpu.vector_store %arg4[%c0_5, %c0_6], %10 {strides = array<i32>} : memref<8x4xf32, #tpu.memory_space<vmem>>, vector<8x4xf32>,
    return
  }
  func.func @transform_0(%arg0: i32) -> (i32, i32) {
    %c0_i32 = arith.constant 0 : i32
    %c0_i32_0 = arith.constant 0 : i32
    return %arg0, %c0_i32 : i32, i32
  }
  func.func @transform_1(%arg0: i32) -> (i32, i32) {
    %c0_i32 = arith.constant 0 : i32
    %c0_i32_0 = arith.constant 0 : i32
    %c0_i32_1 = arith.constant 0 : i32
    return %c0_i32, %c0_i32_0 : i32, i32
  }
  func.func @transform_2(%arg0: i32) -> i32 {
    %c0_i32 = arith.constant 0 : i32
    %c0_i32_0 = arith.constant 0 : i32
    return %c0_i32 : i32
  }
  func.func @transform_3(%arg0: i32) -> (i32, i32) {
    %c0_i32 = arith.constant 0 : i32
    %c0_i32_0 = arith.constant 0 : i32
    return %arg0, %c0_i32 : i32, i32
  }
}

</mosaic_0001>

<llo_original>
// kernel: tpu_custom_call.1
$region0: #{tpu_custom_call.1}
  #allocation0 [shape = 'u32[]', space=smem, size = 0x4, offset = 0x4, fixed_abs, tag = 'smem constant byte address 0x4 - core index']
  #allocation1 [shape = 'u32[72,128]{1,0:T(1,128)}', space=vmem, size = 0x9000, scoped, tag = 'internal scratch']
  #allocation2 [shape = 'f32[1]{0:T(128)S(6)}', space=smem, size = 0x200, scoped, tag = 'scoped memory for tpu_custom_call.1']
  %s0 = inlined_call_operand.vmem [shape: f32[16,128], index: 0, kind: input, shape index: {}]
  %s1 = inlined_call_operand.vmem [shape: f32[128,4], index: 1, kind: input, shape index: {}]
  %s2 = inlined_call_operand.<no memory space> [shape: f32[1], index: 2, kind: input, shape index: {}]
  %s3 = inlined_call_operand.vmem [shape: f32[16,4], index: 3, kind: output, shape index: {}]
  %s4 = sld [smem:[#allocation0]]
  $region45: #{tpu_custom_call.1} parent=0
    _
  %s6 = ssub.s32 1, %s4
  %s7 = scalar_select 0, %s6, %s4
  %8 = sst [smem:[#allocation2]] %s2
  loop: start=0, step=1, limit=4
  $region2: #{tpu_custom_call.1} parent=0 // loop_pre_header
    _
  $region3: #{tpu_custom_call.1} parent=0 // loop_header
    %s10 = sphi 0, %s14
    %p11 = scmp.ge.s32.totalorder %s10, 4
    %s20 = sphi 0, %s22
    %s23 = sphi 0, %s20
    %s24 = sphi 0, %s23
    %s40 = sphi 0, %s24
    %s44 = sphi 0, %s44
    %s46 = sphi 0, %s44
    %s47 = sphi 0, %s46
    %s61 = sphi 0, %s47
    %s65 = sphi 0, %s65
    %s67 = sphi 0, %s65
    %s68 = sphi 0, %s67
    %s82 = sphi 0, %s68
    %s88 = sphi 0, %s90
    %s91 = sphi 0, %s88
    %s92 = sphi 0, %s91
    %s108 = sphi 0, %s92
  $region4: #{tpu_custom_call.1} parent=0 // loop_header_branch
    %13 = sbr.rel (%p11) target = $region8
  $region5: #{tpu_custom_call.1} parent=0 // loop_body
    %s15 = ssub.s32 %s10, 1
    %s16 = ssub.s32 %s10, 2
    %s17 = sadd.s32 %s10, 1
    %s18 = ssub.s32 %s10, %s17
    %p19 = scmp.eq.s32.totalorder %s18, 0
    %s21 = sadd.s32 %s20, 1
    %s22 = scalar_select %p19, %s20, %s21
    %p25 = pneg %p19
    %p26 = scmp.eq.s32.totalorder %s10, 1
    %p27 = por %p25, %p26
    %p28 = scmp.ne.s32.totalorder %s20, %s23
    %p29 = scmp.eq.s32.totalorder %s10, 0
    %p30 = por %p28, %p29
    %p31 = scmp.ne.s32.totalorder %s20, %s23
    %p32 = scmp.eq.s32.totalorder %s15, 1
    %p33 = por %p31, %p32
    %p34 = scmp.ne.s32.totalorder %s23, %s24
    %p35 = scmp.eq.s32.totalorder %s15, 0
    %p36 = por %p34, %p35
    %p37 = scmp.ne.s32.totalorder %s23, %s24
    %p38 = scmp.eq.s32.totalorder %s16, 1
    %p39 = por %p37, %p38
    %p41 = scmp.ne.s32.totalorder %s24, %s40
    %p42 = scmp.eq.s32.totalorder %s16, 0
    %p43 = por %p41, %p42
    %s45 = sadd.s32 %s44, 1
    %p48 = scmp.eq.s32.totalorder %s10, 1
    %p49 = scmp.ne.s32.totalorder %s44, %s46
    %p50 = scmp.eq.s32.totalorder %s10, 0
    %p51 = por %p49, %p50
    %p52 = scmp.ne.s32.totalorder %s44, %s46
    %p53 = scmp.eq.s32.totalorder %s15, 1
    %p54 = por %p52, %p53
    %p55 = scmp.ne.s32.totalorder %s46, %s47
    %p56 = scmp.eq.s32.totalorder %s15, 0
    %p57 = por %p55, %p56
    %p58 = scmp.ne.s32.totalorder %s46, %s47
    %p59 = scmp.eq.s32.totalorder %s16, 1
    %p60 = por %p58, %p59
    %p62 = scmp.ne.s32.totalorder %s47, %s61
    %p63 = scmp.eq.s32.totalorder %s16, 0
    %p64 = por %p62, %p63
    %s66 = sadd.s32 %s65, 1
    %p69 = scmp.eq.s32.totalorder %s10, 1
    %p70 = scmp.ne.s32.totalorder %s65, %s67
    %p71 = scmp.eq.s32.totalorder %s10, 0
    %p72 = por %p70, %p71
    %p73 = scmp.ne.s32.totalorder %s65, %s67
    %p74 = scmp.eq.s32.totalorder %s15, 1
    %p75 = por %p73, %p74
    %p76 = scmp.ne.s32.totalorder %s67, %s68
    %p77 = scmp.eq.s32.totalorder %s15, 0
    %p78 = por %p76, %p77
    %p79 = scmp.ne.s32.totalorder %s67, %s68
    %p80 = scmp.eq.s32.totalorder %s16, 1
    %p81 = por %p79, %p80
    %p83 = scmp.ne.s32.totalorder %s68, %s82
    %p84 = scmp.eq.s32.totalorder %s16, 0
    %p85 = por %p83, %p84
    %s86 = ssub.s32 %s10, %s17
    %p87 = scmp.eq.s32.totalorder %s86, 0
    %s89 = sadd.s32 %s88, 1
    %s90 = scalar_select %p87, %s88, %s89
    %p93 = pneg %p87
    %p94 = scmp.eq.s32.totalorder %s10, 1
    %p95 = por %p93, %p94
    %p96 = scmp.ne.s32.totalorder %s88, %s91
    %p97 = scmp.eq.s32.totalorder %s10, 0
    %p98 = por %p96, %p97
    %p99 = scmp.ne.s32.totalorder %s88, %s91
    %p100 = scmp.eq.s32.totalorder %s15, 1
    %p101 = por %p99, %p100
    %p102 = scmp.ne.s32.totalorder %s91, %s92
    %p103 = scmp.eq.s32.totalorder %s15, 0
    %p104 = por %p102, %p103
    %p105 = scmp.ne.s32.totalorder %s91, %s92
    %p106 = scmp.eq.s32.totalorder %s16, 1
    %p107 = por %p105, %p106
    %p109 = scmp.ne.s32.totalorder %s92, %s108
    %p110 = scmp.eq.s32.totalorder %s16, 0
    %p111 = por %p109, %p110
    %p112 = scmp.le.s32.totalorder 1, %s10
    %p113 = scmp.lt.s32.totalorder %s10, 3
    %p114 = pnand %p112, %p113
    %p115 = pneg %p114
    // Predicated region
    $region9: #{tpu_custom_call.1} parent=5 // pred_check
      _
    $region10: #{tpu_custom_call.1} parent=5 // pred_check_branch
      %117 = sbr.rel (%p114) target = $region12
    $region11: #{tpu_custom_call.1} parent=5 // pred_region
      %s118 = ssub.s32 %s10, 1
      // Predicated region
      $region13: #{tpu_custom_call.1} parent=11 // pred_check
        %p119 = pneg %p57
      $region14: #{tpu_custom_call.1} parent=11 // pred_check_branch
        %121 = sbr.rel (%p119) target = $region16
      $region15: #{tpu_custom_call.1} parent=11 // pred_region
        _
      $region16: #{tpu_custom_call.1} parent=11 // pred_fallthru
        _
      // Predicated region
      $region17: #{tpu_custom_call.1} parent=11 // pred_check
        %p122 = pneg %p78
      $region18: #{tpu_custom_call.1} parent=11 // pred_check_branch
        %124 = sbr.rel (%p122) target = $region20
      $region19: #{tpu_custom_call.1} parent=11 // pred_region
        _
      $region20: #{tpu_custom_call.1} parent=11 // pred_fallthru
        _
    $region12: #{tpu_custom_call.1} parent=5 // pred_fallthru
      _
    %p125 = scmp.lt.s32.totalorder %s10, 2
    // Predicated region
    $region21: #{tpu_custom_call.1} parent=5 // pred_check
      %p126 = pneg %p125
    $region22: #{tpu_custom_call.1} parent=5 // pred_check_branch
      %128 = sbr.rel (%p126) target = $region24
    $region23: #{tpu_custom_call.1} parent=5 // pred_region
      // Predicated region
      $region25: #{tpu_custom_call.1} parent=23 // pred_check
        %p129 = pneg %p30
      $region26: #{tpu_custom_call.1} parent=23 // pred_check_branch
        %131 = sbr.rel (%p129) target = $region28
      $region27: #{tpu_custom_call.1} parent=23 // pred_region
        %p132 = scmp.lt.s32.totalorder %s10, 1
        %s133 = scalar_select %p132, %s10, 1
        %s134 = smul.addr %s133, 8
        %s135 = scalar_lea.vmem %s0, %s134
      $region28: #{tpu_custom_call.1} parent=23 // pred_fallthru
        _
    $region24: #{tpu_custom_call.1} parent=5 // pred_fallthru
      _
    %p136 = scmp.le.s32.totalorder 1, %s10
    %p137 = scmp.lt.s32.totalorder %s10, 3
    %p138 = pnand %p136, %p137
    %p139 = pneg %p138
    // Predicated region
    $region29: #{tpu_custom_call.1} parent=5 // pred_check
      _
    $region30: #{tpu_custom_call.1} parent=5 // pred_check_branch
      %141 = sbr.rel (%p138) target = $region32
    $region31: #{tpu_custom_call.1} parent=5 // pred_region
      %s142 = ssub.s32 %s10, 1
      %p143 = scmp.lt.s32.totalorder %s15, 1
      %s144 = scalar_select %p143, %s15, 1
      %s145 = smul.addr %s144, 8
      %s146 = scalar_lea.vmem %s0, %s145
      %p147 = pneg %p36
      %p148 = pneg %p33
      %p149 = pneg %p57
      %p150 = pneg %p54
      %p151 = pneg %p78
      %p152 = pneg %p75
      %p153 = pneg %p104
      %p154 = pneg %p101
      %p155 = scmp.lt.s32.totalorder %s15, 1
      %s156 = scalar_select %p155, %s15, 1
      %s157 = smul.addr %s156, 8
      %s158 = scalar_lea.vmem %s3, %s157
      %p159 = scmp.lt.s32.totalorder %s15, 1
      %s160 = scalar_select %p159, %s15, 1
      %s161 = smul.addr %s160, 8
      %s162 = scalar_lea.vmem %s0, %s161
      %p163 = scmp.lt.s32.totalorder %s15, 1
      %s164 = scalar_select %p163, %s15, 1
      %s165 = smul.addr %s164, 8
      %s166 = scalar_lea.vmem %s3, %s165
      %v167 = vld [vmem:[%s162] sm:$0xff]
      %v168 = vld [vmem:[%s1] sm:$0xff]
      %v169 = vld [vmem:[%s1 + $0x8] sm:$0xff]
      %v170 = vld [vmem:[%s1 + $0x10] sm:$0xff]
      %v171 = vld [vmem:[%s1 + $0x18] sm:$0xff]
      %v172 = vld [vmem:[%s1 + $0x20] sm:$0xff]
      %v173 = vld [vmem:[%s1 + $0x28] sm:$0xff]
      %v174 = vld [vmem:[%s1 + $0x30] sm:$0xff]
      %v175 = vld [vmem:[%s1 + $0x38] sm:$0xff]
      %v176 = vld [vmem:[%s1 + $0x40] sm:$0xff]
      %v177 = vld [vmem:[%s1 + $0x48] sm:$0xff]
      %v178 = vld [vmem:[%s1 + $0x50] sm:$0xff]
      %v179 = vld [vmem:[%s1 + $0x58] sm:$0xff]
      %v180 = vld [vmem:[%s1 + $0x60] sm:$0xff]
      %v181 = vld [vmem:[%s1 + $0x68] sm:$0xff]
      %v182 = vld [vmem:[%s1 + $0x70] sm:$0xff]
      %v183 = vld [vmem:[%s1 + $0x78] sm:$0xff]
      %s184 = sld [smem:[#allocation2]]
      %v185 = vstv %s184
      %186 = vmatpush.msra.mxu0 %v183
      %187 = vmatpush.msra.mxu0 %v182
      %188 = vmatpush.msra.mxu0 %v181
      %189 = vmatpush.msra.mxu0 %v180
      %190 = vmatpush.msra.mxu0 %v179
      %191 = vmatpush.msra.mxu0 %v178
      %192 = vmatpush.msra.mxu0 %v177
      %193 = vmatpush.msra.mxu0 %v176
      %194 = vmatpush.msra.mxu0 %v175
      %195 = vmatpush.msra.mxu0 %v174
      %196 = vmatpush.msra.mxu0 %v173
      %197 = vmatpush.msra.mxu0 %v172
      %198 = vmatpush.msra.mxu0 %v171
      %199 = vmatpush.msra.mxu0 %v170
      %200 = vmatpush.msra.mxu0 %v169
      %201 = vmatpush.msra.mxu0 %v168
      %202 = vmatmul.f32.gmra.mxu0 %v167
      %v203 = vpop.f32.mrf.mxu0
      %v204 = vadd.f32 %v185, %v203
      %205 = vdwg.mxu0
      %v206 = vxor.u32 %v204, 2147483648
      %v207 = vmul.f32 %v206, 1.442695
      %v208 = vpow.pop %v207
      %v209 = vadd.f32 %v208, 1.0
      %v210 = vrcp.pop %v209
      %v211 = vmul.f32 %v209, %v210
      %v212 = vsub.f32 1.0, %v211
      %v213 = vmul.f32 %v210, %v212
      %v214 = vadd.f32 %v210, %v213
      %vm215 = vweird.f32 %v209
      %vm216 = vweird.f32 %v210
      %vm217 = vmor %vm215, %vm216
      %v218 = vsel %vm217, %v210, %v214
      %v219 = vand.u32 2147483647, %v209
      %vm220 = vcmp.eq.f32.partialorder %v219, 8.507059e+37
      %v221 = vand.u32 %v209, 2147483648
      %v222 = vor.u32 1.1754944e-38, %v221
      %v223 = vsel %vm220, %v222, %v218
      %v224 = vmul.f32 1.0, %v223
      %vm225 = vcmask 31744
      %226 = vst.msk [vmem:[%s166] sm:$0xff] %vm225, %v224
      %p227 = scmp.lt.s32.totalorder %s15, 1
      %s228 = scalar_select %p227, %s15, 1
      %s229 = smul.addr %s228, 8
      %s230 = scalar_lea.vmem %s3, %s229
      // Predicated region
      $region33: #{tpu_custom_call.1} parent=31 // pred_check
        %p231 = pneg %p101
      $region34: #{tpu_custom_call.1} parent=31 // pred_check_branch
        %233 = sbr.rel (%p231) target = $region36
      $region35: #{tpu_custom_call.1} parent=31 // pred_region
        _
      $region36: #{tpu_custom_call.1} parent=31 // pred_fallthru
        _
    $region32: #{tpu_custom_call.1} parent=5 // pred_fallthru
      _
    %p234 = scmp.le.s32.totalorder 2, %s10
    // Predicated region
    $region37: #{tpu_custom_call.1} parent=5 // pred_check
      %p235 = pneg %p234
    $region38: #{tpu_custom_call.1} parent=5 // pred_check_branch
      %237 = sbr.rel (%p235) target = $region40
    $region39: #{tpu_custom_call.1} parent=5 // pred_region
      %s238 = ssub.s32 %s10, 2
      // Predicated region
      $region41: #{tpu_custom_call.1} parent=39 // pred_check
        %p239 = pneg %p107
      $region42: #{tpu_custom_call.1} parent=39 // pred_check_branch
        %241 = sbr.rel (%p239) target = $region44
      $region43: #{tpu_custom_call.1} parent=39 // pred_region
        %p242 = scmp.lt.s32.totalorder %s16, 1
        %s243 = scalar_select %p242, %s16, 1
        %s244 = smul.addr %s243, 8
        %s245 = scalar_lea.vmem %s3, %s244
      $region44: #{tpu_custom_call.1} parent=39 // pred_fallthru
        _
    $region40: #{tpu_custom_call.1} parent=5 // pred_fallthru
      _
  $region6: #{tpu_custom_call.1} parent=0 // loop_footer
    %s14 = sadd.s32 1, %s10
  $region7: #{tpu_custom_call.1} parent=0 // loop_footer_branch
    %9 = sbr.rel target = $region3
  $region8: #{tpu_custom_call.1} parent=0 // loop_exit
    _

</llo_original>
